<compile_context>
chip_gen: v5e
topology: v5e:2x2
jax: 0.10.0
libtpu: 0.0.40
codegen_flags: <defaults>
</compile_context>

<pallas_src>
import functools

import jax
import jax.numpy as jnp
from jax.experimental import pallas as pl
from jax.experimental.pallas import tpu as pltpu


def _quadruplet_kernel(anc_ref, pos_ref, neg1_ref, neg2_ref, out_ref,
                       *, a1, a2, batch, tile_b, tiles_per_core):
    c = pl.program_id(0)   # core-split axis ("parallel")
    i = pl.program_id(1)   # batch-tile axis ("arbitrary", accumulated)

    anc = anc_ref[...].astype(jnp.float32)
    pos = pos_ref[...].astype(jnp.float32)
    neg1 = neg1_ref[...].astype(jnp.float32)
    neg2 = neg2_ref[...].astype(jnp.float32)

    sq_ap = (anc - pos) ** 2
    t1 = sq_ap - (anc - neg1) ** 2       # (a-p)^2 - (a-n1)^2  per element
    t2 = sq_ap - (neg1 - neg2) ** 2      # (a-p)^2 - (n1-n2)^2 per element

    # Two lane-axis reductions instead of three; keep results 2-D ([TB, 1]).
    d1 = jnp.sum(t1, axis=1, keepdims=True)    # d_ap - d_an
    d2 = jnp.sum(t2, axis=1, keepdims=True)    # d_ap - d_nn

    loss = jnp.maximum(d1 + a1, 0.0) + jnp.maximum(d2 + a2, 0.0)   # [TB, 1]

    # Mask rows beyond the true batch size (a zero-padded tail row would
    # otherwise contribute relu(a1) + relu(a2)).
    row_start = (c * tiles_per_core + i) * tile_b
    rows = jax.lax.broadcasted_iota(jnp.int32, loss.shape, 0) + row_start
    loss = jnp.where(rows < batch, loss, 0.0)

    tile_sum = jnp.sum(loss)

    @pl.when(i == 0)
    def _():
        out_ref[0, 0] = tile_sum

    @pl.when(i != 0)
    def _():
        out_ref[0, 0] = out_ref[0, 0] + tile_sum


def _round_up(x, m):
    return ((x + m - 1) // m) * m


def _pick_tiling(batch, feat):
    """Returns (tile_rows, num_core_splits, tiles_per_core)."""
    # VMEM budget (v7x-safe): 4 inputs * 2 pipeline buffers * TB * D * 4B <= ~24 MiB.
    budget_rows = (24 * 1024 * 1024) // (4 * 2 * 4 * max(feat, 1))
    tb = max(8, min(1024, (budget_rows // 8) * 8))
    # Prefer at least two batch tiles so the "parallel" axis can use both
    # TensorCores on v7x (a harmless sequential loop on single-TC v5e/v6e).
    half = _round_up(max(-(-batch // 2), 1), 8)
    tb = min(tb, max(8, half))
    num_tiles = -(-batch // tb)
    nc = 2 if num_tiles >= 2 else 1
    tiles_per_core = -(-num_tiles // nc)
    return tb, nc, tiles_per_core


def quadruplet_loss(anc, pos, neg1, neg2, a1=1.0, a2=1.0, size_average=True):
    """Pallas TPU implementation of QuadrupletLoss.forward.

    Args:
      anc, pos, neg1, neg2: [B, D] float arrays (f32 or bf16).
    Returns:
      scalar float32 loss.
    """
    assert anc.shape == pos.shape == neg1.shape == neg2.shape
    assert anc.ndim == 2
    B, D = anc.shape

    tb, nc, tpc = _pick_tiling(B, D)
    b_pad = nc * tpc * tb
    if b_pad != B:
        pad = ((0, b_pad - B), (0, 0))
        anc, pos, neg1, neg2 = (jnp.pad(x, pad) for x in (anc, pos, neg1, neg2))

    kernel = functools.partial(
        _quadruplet_kernel,
        a1=float(a1), a2=float(a2), batch=B, tile_b=tb, tiles_per_core=tpc)

    in_spec = pl.BlockSpec((tb, D), lambda c, i: (c * tpc + i, 0))
    out_spec = pl.BlockSpec((1, 1), lambda c, i: (c, 0),
                            memory_space=pltpu.MemorySpace.SMEM)

    partials = pl.pallas_call(
        kernel,
        out_shape=jax.ShapeDtypeStruct((nc, 1), jnp.float32),
        grid=(nc, tpc),
        in_specs=[in_spec, in_spec, in_spec, in_spec],
        out_specs=out_spec,
        compiler_params=pltpu.CompilerParams(
            dimension_semantics=("parallel", "arbitrary"),
            vmem_limit_bytes=48 * 1024 * 1024),
    )(anc, pos, neg1, neg2)

    total = jnp.sum(partials)
    return total / B if size_average else total


def _reference(anc, pos, neg1, neg2, a1=1.0, a2=1.0, size_average=True):
    anc, pos, neg1, neg2 = (x.astype(jnp.float32) for x in (anc, pos, neg1, neg2))
    d_ap = jnp.sum((anc - pos) ** 2, axis=1)
    d_an = jnp.sum((anc - neg1) ** 2, axis=1)
    d_nn = jnp.sum((neg1 - neg2) ** 2, axis=1)
    loss = jax.nn.relu(d_ap - d_an + a1) + jax.nn.relu(d_ap - d_nn + a2)
    return jnp.mean(loss) if size_average else jnp.sum(loss)


if __name__ == "__main__":
    key = jax.random.PRNGKey(0)

    # Primary small case: batch of 8 embeddings with feature dim 128.
    B, D = 8, 128
    k1, k2, k3, k4, k5 = jax.random.split(key, 5)
    anc = jax.random.normal(k1, (B, D), dtype=jnp.float32)
    pos = jax.random.normal(k2, (B, D), dtype=jnp.float32)
    neg1 = jax.random.normal(k3, (B, D), dtype=jnp.float32)
    neg2 = jax.random.normal(k4, (B, D), dtype=jnp.float32)

    out = quadruplet_loss(anc, pos, neg1, neg2, a1=1.0, a2=1.0,
                          size_average=True)
    out = jax.block_until_ready(out)
    ref = _reference(anc, pos, neg1, neg2, a1=1.0, a2=1.0, size_average=True)
    assert jnp.allclose(out, ref, rtol=1e-5, atol=1e-5), (out, ref)

    # Secondary case exercising tiling, padded-tail masking, the 2-way core
    # split, and the size_average=False path.
    B2, D2 = 37, 256
    ka, kb, kc, kd = jax.random.split(k5, 4)
    anc2 = jax.random.normal(ka, (B2, D2), dtype=jnp.float32)
    pos2 = jax.random.normal(kb, (B2, D2), dtype=jnp.float32)
    neg12 = jax.random.normal(kc, (B2, D2), dtype=jnp.float32)
    neg22 = jax.random.normal(kd, (B2, D2), dtype=jnp.float32)

    out2 = quadruplet_loss(anc2, pos2, neg12, neg22, a1=0.5, a2=2.0,
                           size_average=False)
    out2 = jax.block_until_ready(out2)
    ref2 = _reference(anc2, pos2, neg12, neg22, a1=0.5, a2=2.0,
                      size_average=False)
    assert jnp.allclose(out2, ref2, rtol=1e-4, atol=1e-4), (out2, ref2)

    print("KERNEL_OK")
</pallas_src>

<mosaic_0001>
module attributes {stable_mosaic.version = 11 : i64} {
  func.func @_quadruplet_kernel(%arg0: i32, %arg1: i32, %arg2: memref<8x128xf32, #tpu.memory_space<vmem>>, %arg3: memref<8x128xf32, #tpu.memory_space<vmem>>, %arg4: memref<8x128xf32, #tpu.memory_space<vmem>>, %arg5: memref<8x128xf32, #tpu.memory_space<vmem>>, %arg6: memref<1x1xf32, #tpu.memory_space<smem>>) attributes {dimension_semantics = [#tpu.dimension_semantics<parallel>, #tpu.dimension_semantics<arbitrary>], iteration_bounds = array<i64: 1, 1>, scalar_prefetch = 0 : i64, scratch_operands = 0 : i64, tpu.core_type = #tpu.core_type<tc>, window_params = [{transform_indices = @transform_0, window_bounds = array<i64: 8, 128>}, {transform_indices = @transform_1, window_bounds = array<i64: 8, 128>}, {transform_indices = @transform_2, window_bounds = array<i64: 8, 128>}, {transform_indices = @transform_3, window_bounds = array<i64: 8, 128>}, {transform_indices = @transform_4, window_bounds = array<i64: 1, 1>}]} {
    %c0 = arith.constant 0 : index
    %c0_0 = arith.constant 0 : index
    %0 = vector.load %arg2[%c0, %c0_0] : memref<8x128xf32, #tpu.memory_space<vmem>>, vector<8x128xf32>
    %c0_1 = arith.constant 0 : index
    %c0_2 = arith.constant 0 : index
    %1 = vector.load %arg3[%c0_1, %c0_2] : memref<8x128xf32, #tpu.memory_space<vmem>>, vector<8x128xf32>
    %c0_3 = arith.constant 0 : index
    %c0_4 = arith.constant 0 : index
    %2 = vector.load %arg4[%c0_3, %c0_4] : memref<8x128xf32, #tpu.memory_space<vmem>>, vector<8x128xf32>
    %c0_5 = arith.constant 0 : index
    %c0_6 = arith.constant 0 : index
    %3 = vector.load %arg5[%c0_5, %c0_6] : memref<8x128xf32, #tpu.memory_space<vmem>>, vector<8x128xf32>
    %4 = arith.subf %0, %1 : vector<8x128xf32>
    %5 = arith.mulf %4, %4 : vector<8x128xf32>
    %6 = arith.subf %0, %2 : vector<8x128xf32>
    %7 = arith.mulf %6, %6 : vector<8x128xf32>
    %8 = arith.subf %5, %7 : vector<8x128xf32>
    %9 = arith.subf %2, %3 : vector<8x128xf32>
    %10 = arith.mulf %9, %9 : vector<8x128xf32>
    %11 = arith.subf %5, %10 : vector<8x128xf32>
    %cst = arith.constant dense<0.000000e+00> : vector<8xf32>
    %12 = vector.multi_reduction <add>, %8, %cst [1] : vector<8x128xf32> to vector<8xf32>
    %13 = vector.shape_cast %12 : vector<8xf32> to vector<8x1xf32>
    %cst_7 = arith.constant dense<0.000000e+00> : vector<8xf32>
    %14 = vector.multi_reduction <add>, %11, %cst_7 [1] : vector<8x128xf32> to vector<8xf32>
    %15 = vector.shape_cast %14 : vector<8xf32> to vector<8x1xf32>
    %cst_8 = arith.constant 1.000000e+00 : f32
    %16 = vector.broadcast %cst_8 : f32 to vector<8x1xf32>
    %17 = arith.addf %13, %16 : vector<8x1xf32>
    %cst_9 = arith.constant 0.000000e+00 : f32
    %18 = vector.broadcast %cst_9 : f32 to vector<8x1xf32>
    %19 = arith.maximumf %17, %18 : vector<8x1xf32>
    %cst_10 = arith.constant 1.000000e+00 : f32
    %20 = vector.broadcast %cst_10 : f32 to vector<8x1xf32>
    %21 = arith.addf %15, %20 : vector<8x1xf32>
    %cst_11 = arith.constant 0.000000e+00 : f32
    %22 = vector.broadcast %cst_11 : f32 to vector<8x1xf32>
    %23 = arith.maximumf %21, %22 : vector<8x1xf32>
    %24 = arith.addf %19, %23 : vector<8x1xf32>
    %c1_i32 = arith.constant 1 : i32
    %25 = arith.muli %arg0, %c1_i32 : i32
    %26 = arith.addi %25, %arg1 : i32
    %c8_i32 = arith.constant 8 : i32
    %27 = arith.muli %26, %c8_i32 : i32
    %28 = tpu.iota {dimensions = array<i32: 0>} : vector<8x1xi32>
    %29 = vector.broadcast %27 : i32 to vector<8x1xi32>
    %30 = arith.addi %28, %29 : vector<8x1xi32>
    %c8_i32_12 = arith.constant 8 : i32
    %31 = vector.broadcast %c8_i32_12 : i32 to vector<8x1xi32>
    %32 = arith.cmpi slt, %30, %31 : vector<8x1xi32>
    %cst_13 = arith.constant 0.000000e+00 : f32
    %33 = vector.broadcast %cst_13 : f32 to vector<8x1xf32>
    %34 = arith.select %32, %24, %33 : vector<8x1xi1>, vector<8x1xf32>
    %35 = vector.shape_cast %34 : vector<8x1xf32> to vector<1x8x1xf32>
    %cst_14 = arith.constant dense<0.000000e+00> : vector<1xf32>
    %36 = vector.multi_reduction <add>, %35, %cst_14 [1, 2] : vector<1x8x1xf32> to vector<1xf32>
    %37 = vector.shape_cast %36 : vector<1xf32> to vector<1x1x1xf32>
    %38 = vector.extract %37[0, 0, 0] : f32 from vector<1x1x1xf32>
    %c0_i32 = arith.constant 0 : i32
    %39 = arith.cmpi eq, %arg1, %c0_i32 : i32
    %40 = arith.extui %39 : i1 to i32
    %c0_i32_15 = arith.constant 0 : i32
    %41 = arith.cmpi ne, %40, %c0_i32_15 : i32
    scf.if %41 {
      %c0_18 = arith.constant 0 : index
      %c0_19 = arith.constant 0 : index
      %45 = memref.load %arg6[%c0_18, %c0_19] : memref<1x1xf32, #tpu.memory_space<smem>>
      memref.store %38, %arg6[%c0_18, %c0_19] : memref<1x1xf32, #tpu.memory_space<smem>>
    } else {
    }
    %c0_i32_16 = arith.constant 0 : i32
    %42 = arith.cmpi ne, %arg1, %c0_i32_16 : i32
    %43 = arith.extui %42 : i1 to i32
    %c0_i32_17 = arith.constant 0 : i32
    %44 = arith.cmpi ne, %43, %c0_i32_17 : i32
    scf.if %44 {
      %c0_18 = arith.constant 0 : index
      %c0_19 = arith.constant 0 : index
      %45 = memref.load %arg6[%c0_18, %c0_19] : memref<1x1xf32, #tpu.memory_space<smem>>
      %46 = arith.addf %45, %38 : f32
      %c0_20 = arith.constant 0 : index
      %c0_21 = arith.constant 0 : index
      %47 = memref.load %arg6[%c0_20, %c0_21] : memref<1x1xf32, #tpu.memory_space<smem>>
      memref.store %46, %arg6[%c0_20, %c0_21] : memref<1x1xf32, #tpu.memory_space<smem>>
    } else {
    }
    return
  }
  func.func @transform_0(%arg0: i32, %arg1: i32) -> (i32, i32) {
    %c1_i32 = arith.constant 1 : i32
    %0 = arith.muli %arg0, %c1_i32 : i32
    %1 = arith.addi %0, %arg1 : i32
    %c0_i32 = arith.constant 0 : i32
    %c0_i32_0 = arith.constant 0 : i32
    return %1, %c0_i32 : i32, i32
  }
  func.func @transform_1(%arg0: i32, %arg1: i32) -> (i32, i32) {
    %c1_i32 = arith.constant 1 : i32
    %0 = arith.muli %arg0, %c1_i32 : i32
    %1 = arith.addi %0, %arg1 : i32
    %c0_i32 = arith.constant 0 : i32
    %c0_i32_0 = arith.constant 0 : i32
    return %1, %c0_i32 : i32, i32
  }
  func.func @transform_2(%arg0: i32, %arg1: i32) -> (i32, i32) {
    %c1_i32 = arith.constant 1 : i32
    %0 = arith.muli %arg0, %c1_i32 : i32
    %1 = arith.addi %0, %arg1 : i32
    %c0_i32 = arith.constant 0 : i32
    %c0_i32_0 = arith.constant 0 : i32
    return %1, %c0_i32 : i32, i32
  }
  func.func @transform_3(%arg0: i32, %arg1: i32) -> (i32, i32) {
    %c1_i32 = arith.constant 1 : i32
    %0 = arith.muli %arg0, %c1_i32 : i32
    %1 = arith.addi %0, %arg1 : i32
    %c0_i32 = arith.constant 0 : i32
    %c0_i32_0 = arith.constant 0 : i32
    return %1, %c0_i32 : i32, i32
  }
  func.func @transform_4(%arg0: i32, %arg1: i32) -> (i32, i32) {
    %c0_i32 = arith.constant 0 : i32
    %c0_i32_0 = arith.constant 0 : i32
    return %arg0, %c0_i32 : i32, i32
  }
}

</mosaic_0001>

<llo_original>
// kernel: tpu_custom_call.1
$region0: #{tpu_custom_call.1}
  #allocation0 [shape = 'u32[]', space=smem, size = 0x4, offset = 0x4, fixed_abs, tag = 'smem constant byte address 0x4 - core index']
  #allocation1 [shape = 'u32[72,128]{1,0:T(1,128)}', space=vmem, size = 0x9000, scoped, tag = 'internal scratch']
  %s0 = inlined_call_operand.hbm [shape: f32[8,128], index: 0, kind: input, shape index: {}]
  %s1 = inlined_call_operand.hbm [shape: f32[8,128], index: 1, kind: input, shape index: {}]
  %s2 = inlined_call_operand.hbm [shape: f32[8,128], index: 2, kind: input, shape index: {}]
  %s3 = inlined_call_operand.hbm [shape: f32[8,128], index: 3, kind: input, shape index: {}]
  %s4 = inlined_call_operand.hbm [shape: f32[1,1], index: 4, kind: output, shape index: {}]
  %s5 = sld [smem:[#allocation0]]
  $region50: #{tpu_custom_call.1} parent=0
    _
  %s7 = ssub.s32 1, %s5
  %s8 = scalar_select 0, %s7, %s5
  $region1: #{tpu_custom_call.1} parent=0
    #allocation2 [shape = 'u8[4096]{0}', space=vmem, size = 0x1000, scoped, tag = 'input window, operand 0, single buffered']
    #allocation3 [shape = 's32[1]{0}', space=sflag, size = 0x4, scoped, tag = 'scoped memory for tpu_custom_call.1']
    #allocation4 [shape = 's32[1]{0}', space=sflag, size = 0x4, scoped, tag = 'scoped memory for tpu_custom_call.1']
    #allocation5 [shape = 'u8[4096]{0}', space=vmem, size = 0x1000, scoped, tag = 'input window, operand 1, single buffered']
    #allocation6 [shape = 's32[1]{0}', space=sflag, size = 0x4, scoped, tag = 'scoped memory for tpu_custom_call.1']
    #allocation7 [shape = 'u8[4096]{0}', space=vmem, size = 0x1000, scoped, tag = 'input window, operand 2, single buffered']
    #allocation8 [shape = 'u8[4096]{0}', space=vmem, size = 0x1000, scoped, tag = 'input window, operand 3, single buffered']
    #allocation9 [shape = 's32[1]{0}', space=sflag, size = 0x4, scoped, tag = 'scoped memory for tpu_custom_call.1']
    #allocation10 [shape = 'u8[512]{0}', space=smem, size = 0x200, scoped, tag = 'output window, operand 0, single buffered']
    %9 = vsyncpa [#allocation3], 0
    %10 = vsyncpa [#allocation6], 0
    %11 = vsyncpa [#allocation9], 0
    %12 = vsyncpa [#allocation4], 0
    // Predicated region
    $region2: #{tpu_custom_call.1} parent=1 // pred_check
      _
    $region3: #{tpu_custom_call.1} parent=1 // pred_check_branch
      %14 = sbr.rel (0) target = $region5
    $region4: #{tpu_custom_call.1} parent=1 // pred_region
      %s15 = sadd.s32 0, 0
      %17 = vsyncadd [#allocation3], 0
      %s18 = smul.addr %s15, 8
      %s19 = scalar_lea.hbm %s0, %s18
      %s21 = sshll.u32 %s19, 4
      %s22 = int_to_ptr.hbm [resolvable:$true] %s21
      %s23 = sshll.u32 [#allocation2], 4
      %s24 = int_to_ptr.vmem [resolvable:$true] %s23
      %26 = dma.hbm_to_vmem [thread:$0]  %s22, 128, %s24, [#allocation3]
    $region5: #{tpu_custom_call.1} parent=1 // pred_fallthru
      _
    // Predicated region
    $region6: #{tpu_custom_call.1} parent=1 // pred_check
      _
    $region7: #{tpu_custom_call.1} parent=1 // pred_check_branch
      %28 = sbr.rel (0) target = $region9
    $region8: #{tpu_custom_call.1} parent=1 // pred_region
      %s29 = sadd.s32 0, 0
      %31 = vsyncadd [#allocation6], 0
      %s32 = smul.addr %s29, 8
      %s33 = scalar_lea.hbm %s1, %s32
      %s35 = sshll.u32 %s33, 4
      %s36 = int_to_ptr.hbm [resolvable:$true] %s35
      %s37 = sshll.u32 [#allocation5], 4
      %s38 = int_to_ptr.vmem [resolvable:$true] %s37
      %40 = dma.hbm_to_vmem [thread:$0]  %s36, 128, %s38, [#allocation6]
    $region9: #{tpu_custom_call.1} parent=1 // pred_fallthru
      _
    // Predicated region
    $region10: #{tpu_custom_call.1} parent=1 // pred_check
      _
    $region11: #{tpu_custom_call.1} parent=1 // pred_check_branch
      %42 = sbr.rel (0) target = $region13
    $region12: #{tpu_custom_call.1} parent=1 // pred_region
      %s43 = sadd.s32 0, 0
      %45 = vsyncadd [#allocation6], 0
      %s46 = smul.addr %s43, 8
      %s47 = scalar_lea.hbm %s2, %s46
      %s49 = sshll.u32 %s47, 4
      %s50 = int_to_ptr.hbm [resolvable:$true] %s49
      %s51 = sshll.u32 [#allocation7], 4
      %s52 = int_to_ptr.vmem [resolvable:$true] %s51
      %54 = dma.hbm_to_vmem [thread:$0]  %s50, 128, %s52, [#allocation6]
    $region13: #{tpu_custom_call.1} parent=1 // pred_fallthru
      _
    // Predicated region
    $region14: #{tpu_custom_call.1} parent=1 // pred_check
      _
    $region15: #{tpu_custom_call.1} parent=1 // pred_check_branch
      %56 = sbr.rel (0) target = $region17
    $region16: #{tpu_custom_call.1} parent=1 // pred_region
      %s57 = sadd.s32 0, 0
      %59 = vsyncadd [#allocation9], 0
      %s60 = smul.addr %s57, 8
      %s61 = scalar_lea.hbm %s3, %s60
      %s63 = sshll.u32 %s61, 4
      %s64 = int_to_ptr.hbm [resolvable:$true] %s63
      %s65 = sshll.u32 [#allocation8], 4
      %s66 = int_to_ptr.vmem [resolvable:$true] %s65
      %68 = dma.hbm_to_vmem [thread:$0]  %s64, 128, %s66, [#allocation9]
    $region17: #{tpu_custom_call.1} parent=1 // pred_fallthru
      _
    // Predicated region
    $region18: #{tpu_custom_call.1} parent=1 // pred_check
      _
    $region19: #{tpu_custom_call.1} parent=1 // pred_check_branch
      %70 = sbr.rel (0) target = $region21
    $region20: #{tpu_custom_call.1} parent=1 // pred_region
      %72 = dma.done [#allocation3], 128
    $region21: #{tpu_custom_call.1} parent=1 // pred_fallthru
      _
    // Predicated region
    $region22: #{tpu_custom_call.1} parent=1 // pred_check
      _
    $region23: #{tpu_custom_call.1} parent=1 // pred_check_branch
      %74 = sbr.rel (0) target = $region25
    $region24: #{tpu_custom_call.1} parent=1 // pred_region
      %76 = dma.done [#allocation6], 128
    $region25: #{tpu_custom_call.1} parent=1 // pred_fallthru
      _
    // Predicated region
    $region26: #{tpu_custom_call.1} parent=1 // pred_check
      _
    $region27: #{tpu_custom_call.1} parent=1 // pred_check_branch
      %78 = sbr.rel (0) target = $region29
    $region28: #{tpu_custom_call.1} parent=1 // pred_region
      %80 = dma.done [#allocation6], 128
    $region29: #{tpu_custom_call.1} parent=1 // pred_fallthru
      _
    // Predicated region
    $region30: #{tpu_custom_call.1} parent=1 // pred_check
      _
    $region31: #{tpu_custom_call.1} parent=1 // pred_check_branch
      %82 = sbr.rel (0) target = $region33
    $region32: #{tpu_custom_call.1} parent=1 // pred_region
      %84 = dma.done [#allocation9], 128
    $region33: #{tpu_custom_call.1} parent=1 // pred_fallthru
      _
    %s85 = sadd.s32 0, 0
    %s86 = sadd.s32 0, 0
    %s87 = sadd.s32 0, 0
    %s88 = sadd.s32 0, 0
    %v89 = vld [vmem:[#allocation2] sm:$0xff]
    %v90 = vld [vmem:[#allocation5] sm:$0xff]
    %v91 = vld [vmem:[#allocation7] sm:$0xff]
    %v92 = vld [vmem:[#allocation8] sm:$0xff]
    %v93 = vsub.f32 %v89, %v90
    %v94 = vmul.f32 %v93, %v93
    %v95 = vsub.f32 %v89, %v91
    %v96 = vmul.f32 %v95, %v95
    %v97 = vsub.f32 %v94, %v96
    %v98 = vsub.f32 %v91, %v92
    %v99 = vmul.f32 %v98, %v98
    %v100 = vsub.f32 %v94, %v99
    %101 = vadd.xlane.f32.xlu0 %v97
    %v102 = vpop.xlane.xlu0 %101
    %103 = vadd.xlane.f32.xlu0 %v100
    %v104 = vpop.xlane.xlu0 %103
    %v105 = vadd.f32 %v102, 1.0
    %v106 = vmax.f32 %v105, 0.0
    %v107 = vadd.f32 %v104, 1.0
    %v108 = vmax.f32 %v107, 0.0
    %v109 = vadd.f32 %v106, %v108
    %s110 = sadd.s32 0, 0
    %s111 = smul.u32 %s110, 8
    %v112 = vlaneseq
    %v113 = vshrl.u32 %v112, 7
    %v114 = vstv %s111
    %v115 = vadd.s32 %v113, %v114
    %vm116 = vcmp.lt.s32.totalorder %v115, 8
    %v117 = vsel %vm116, %v109, 0.0
    %vm118 = vcmask 7168
    %v119 = vsel %vm118, %v117, 0.0
    %120 = vadd.xlane.f32.xlu0 %v119
    %v121 = vpop.xlane.xlu0 %120
    %v122 = vrot.slane %v121, 4
    %v123 = vadd.f32 %v121, %v122
    %v124 = vrot.slane %v123, 2
    %v125 = vadd.f32 %v123, %v124
    %v126 = vrot.slane %v125, 1
    %v127 = vadd.f32 %v125, %v126
    %s128 = vtos %v127
    %p129 = scmp.eq.s32.totalorder 0, 0
    // Predicated region
    $region34: #{tpu_custom_call.1} parent=1 // pred_check
      %p130 = pneg %p129
    $region35: #{tpu_custom_call.1} parent=1 // pred_check_branch
      %132 = sbr.rel (%p130) target = $region37
    $region36: #{tpu_custom_call.1} parent=1 // pred_region
      %s133 = scalar_lea.smem [#allocation10], 0
      %134 = sst [smem:[%s133]] %s128
    $region37: #{tpu_custom_call.1} parent=1 // pred_fallthru
      _
    %p135 = scmp.ne.s32.totalorder 0, 0
    // Predicated region
    $region38: #{tpu_custom_call.1} parent=1 // pred_check
      %p136 = pneg %p135
    $region39: #{tpu_custom_call.1} parent=1 // pred_check_branch
      %138 = sbr.rel (%p136) target = $region41
    $region40: #{tpu_custom_call.1} parent=1 // pred_region
      %s139 = sld [smem:[#allocation10]]
      %s140 = sadd.f32 %s139, %s128
      %s141 = scalar_lea.smem [#allocation10], 0
      %142 = sst [smem:[%s141]] %s140
    $region41: #{tpu_custom_call.1} parent=1 // pred_fallthru
      _
    // Predicated region
    $region42: #{tpu_custom_call.1} parent=1 // pred_check
      _
    $region43: #{tpu_custom_call.1} parent=1 // pred_check_branch
      %144 = sbr.rel (0) target = $region45
    $region44: #{tpu_custom_call.1} parent=1 // pred_region
      %146 = vsyncadd [#allocation4], 0
      %s148 = sshll.u32 %s4, 4
      %s149 = int_to_ptr.hbm [resolvable:$true] %s148
      %151 = dma.smem_to_hbm [#allocation10], 16, %s149, [#allocation4]
    $region45: #{tpu_custom_call.1} parent=1 // pred_fallthru
      _
    // Predicated region
    $region46: #{tpu_custom_call.1} parent=1 // pred_check
      _
    $region47: #{tpu_custom_call.1} parent=1 // pred_check_branch
      %153 = sbr.rel (0) target = $region49
    $region48: #{tpu_custom_call.1} parent=1 // pred_region
      %155 = dma.done [#allocation4], 16
    $region49: #{tpu_custom_call.1} parent=1 // pred_fallthru
      _
    %156 = sfence
    %157 = vsyncpa [#allocation3], 1
    %158 = vsyncpa [#allocation6], 1
    %159 = vsyncpa [#allocation9], 1
    %160 = vsyncpa [#allocation4], 1

</llo_original>
